<compile_context>
chip_gen: v5e
topology: v5e:2x2
jax: 0.10.0
libtpu: 0.0.40
codegen_flags: <defaults>
</compile_context>

<pallas_src>
import jax
import jax.numpy as jnp
from jax.experimental import pallas as pl
from jax.experimental.pallas import tpu as pltpu


def attn_kernel(enc_ref, we_ref, hproj_ref, v_ref, mask_ref, o_ref):
    # enc_ref  : (Bt*S, I)  encoder_outputs rows for this batch tile (flattened)
    # we_ref   : (I, H)     encoder half of attn.weight, transposed
    # hproj_ref: (Bt, H)    hidden @ W_h^T + b_attn, one row per batch element
    # v_ref    : (1, H)     score.weight row
    # mask_ref : (Bt, S)    1.0 = keep, 0.0 = mask out (lane-dense)
    # o_ref    : (Bt, S)    softmax-ed attention energies (lane-dense)
    Bt, S = mask_ref.shape
    H = we_ref.shape[1]

    # Tall MXU matmul: (Bt*S, I) @ (I, H), f32 accumulation.
    proj = jnp.dot(enc_ref[...], we_ref[...], preferred_element_type=jnp.float32)

    # Add the per-batch hidden projection (+bias) and apply tanh.  Reshape only
    # splits leading (non-lane) dims; the lane dim (H) is unchanged.
    feat = jnp.tanh(proj.reshape(Bt, S, H) + hproj_ref[...][:, None, :])

    # H -> 1 score projection as VPU multiply + cross-lane reduce (MXU stays idle).
    scores = jnp.sum(feat * v_ref[...][None, :, :], axis=-1)          # (Bt, S)

    scores = jnp.where(mask_ref[...] > 0.0, scores, jnp.float32(-1e12))

    # Per-row softmax over S (kept in float32).
    m = jnp.max(scores, axis=-1, keepdims=True)
    e = jnp.exp(scores - m)
    denom = jnp.sum(e, axis=-1, keepdims=True)
    o_ref[...] = (e / denom).astype(o_ref.dtype)


def attn_forward(hidden, encoder_outputs, seq_mask, w_attn, b_attn, w_score,
                 *, b_tile=None, matmul_dtype=None):
    """
    hidden          : (B, 1, H) float32
    encoder_outputs : (B, S, I) float32
    seq_mask        : (B, S)    bool
    w_attn          : (H, H+I)  float32   (nn.Linear(hidden+input, hidden).weight)
    b_attn          : (H,)      float32
    w_score         : (1, H)    float32   (nn.Linear(hidden, 1, bias=False).weight)
    returns         : (B, S)    float32
    """
    B, S, I = encoder_outputs.shape
    H = hidden.shape[-1]

    # Split attn.weight: the first H input columns act on `hidden`, the last I on
    # encoder_outputs.  The hidden part collapses to one (B, H) row per batch.
    w_h = w_attn[:, :H]                          # (H, H)
    w_e_t = w_attn[:, H:].T                      # (I, H)
    h_proj = hidden[:, 0, :] @ w_h.T + b_attn    # (B, H)  -- tiny, done once outside

    mask_f = seq_mask.astype(jnp.float32)        # (B, S)  lane-dense

    # Batch tiling: fold several batch elements per grid step so the matmul M-dim is
    # tall and per-step pipeline overhead (~0.35 us) is amortized.
    if b_tile is None:
        b_tile = B if B <= 8 else min(128, ((min(B, 128) + 7) // 8) * 8)
    n_blocks = pl.cdiv(B, b_tile)
    Bp = n_blocks * b_tile
    if Bp != B:
        pad = Bp - B
        encoder_outputs = jnp.pad(encoder_outputs, ((0, pad), (0, 0), (0, 0)))
        h_proj = jnp.pad(h_proj, ((0, pad), (0, 0)))
        mask_f = jnp.pad(mask_f, ((0, pad), (0, 0)))   # padded rows fully masked

    if matmul_dtype is not None:
        # e.g. jnp.bfloat16 on v6e/v7x: halves encoder DMA; accumulation stays f32.
        encoder_outputs = encoder_outputs.astype(matmul_dtype)
        w_e_t = w_e_t.astype(matmul_dtype)

    enc2d = encoder_outputs.reshape(Bp * S, I)   # contiguous reshape, no data movement

    out = pl.pallas_call(
        attn_kernel,
        out_shape=jax.ShapeDtypeStruct((Bp, S), jnp.float32),
        grid=(n_blocks,),
        in_specs=[
            pl.BlockSpec((b_tile * S, I), lambda b: (b, 0)),   # encoder rows
            pl.BlockSpec((I, H), lambda b: (0, 0)),            # W_e^T (resident)
            pl.BlockSpec((b_tile, H), lambda b: (b, 0)),       # hidden projection rows
            pl.BlockSpec((1, H), lambda b: (0, 0)),            # score vector
            pl.BlockSpec((b_tile, S), lambda b: (b, 0)),       # mask (lane-dense)
        ],
        out_specs=pl.BlockSpec((b_tile, S), lambda b: (b, 0)),
        compiler_params=pltpu.CompilerParams(
            dimension_semantics=("parallel",)),
    )(enc2d, w_e_t, h_proj, w_score, mask_f)

    return out[:B]                               # drop batch padding (no-op if none)


def attn_reference(hidden, encoder_outputs, seq_mask, w_attn, b_attn, w_score):
    B, S, I = encoder_outputs.shape
    H = hidden.shape[-1]
    hidden_rep = jnp.broadcast_to(hidden, (B, S, H))
    energy_in = jnp.concatenate([hidden_rep, encoder_outputs], axis=2)
    feat = jnp.tanh(energy_in @ w_attn.T + b_attn)
    scores = (feat @ w_score.T)[..., 0]
    scores = jnp.where(seq_mask, scores, -1e12)
    return jax.nn.softmax(scores, axis=1)


if __name__ == "__main__":
    B, S = 2, 8
    input_size, hidden_size = 16, 32

    key = jax.random.PRNGKey(0)
    k1, k2, k3, k4, k5, _ = jax.random.split(key, 6)

    # Deterministic parameter init (shapes from the nn.Linear definitions).
    fan_in_attn = hidden_size + input_size
    w_attn = jax.random.uniform(k1, (hidden_size, fan_in_attn), jnp.float32,
                                -1.0 / fan_in_attn ** 0.5, 1.0 / fan_in_attn ** 0.5)
    b_attn = jax.random.uniform(k2, (hidden_size,), jnp.float32,
                                -1.0 / fan_in_attn ** 0.5, 1.0 / fan_in_attn ** 0.5)
    w_score = jax.random.uniform(k3, (1, hidden_size), jnp.float32,
                                 -1.0 / hidden_size ** 0.5, 1.0 / hidden_size ** 0.5)

    # Example inputs.
    hidden = jax.random.normal(k4, (B, 1, hidden_size), jnp.float32)
    encoder_outputs = jax.random.normal(k5, (B, S, input_size), jnp.float32)
    # Mask out the tail of the second sequence.
    seq_mask = jnp.arange(S)[None, :] < jnp.array([[S], [S - 3]])

    out = attn_forward(hidden, encoder_outputs, seq_mask, w_attn, b_attn, w_score)
    out = jax.block_until_ready(out)

    ref = attn_reference(hidden, encoder_outputs, seq_mask, w_attn, b_attn, w_score)
    assert out.shape == (B, S)
    assert jnp.allclose(out, ref, atol=1e-5, rtol=1e-5), (out, ref)

    print("KERNEL_OK")
</pallas_src>

<mosaic_0001>
module attributes {stable_mosaic.version = 11 : i64} {
  func.func @attn_kernel(%arg0: i32, %arg1: memref<16x16xf32, #tpu.memory_space<vmem>>, %arg2: memref<16x32xf32, #tpu.memory_space<vmem>>, %arg3: memref<2x32xf32, #tpu.memory_space<vmem>>, %arg4: memref<1x32xf32, #tpu.memory_space<vmem>>, %arg5: memref<2x8xf32, #tpu.memory_space<vmem>>, %arg6: memref<2x8xf32, #tpu.memory_space<vmem>>) attributes {dimension_semantics = [#tpu.dimension_semantics<parallel>], iteration_bounds = array<i64: 1>, scalar_prefetch = 0 : i64, scratch_operands = 0 : i64, tpu.core_type = #tpu.core_type<tc>, window_params = [{transform_indices = @transform_0, window_bounds = array<i64: 16, 16>}, {pipeline_mode = #tpu.pipeline_mode<synchronous>, transform_indices = @transform_1, window_bounds = array<i64: 16, 32>}, {transform_indices = @transform_2, window_bounds = array<i64: 2, 32>}, {pipeline_mode = #tpu.pipeline_mode<synchronous>, transform_indices = @transform_3, window_bounds = array<i64: 1, 32>}, {transform_indices = @transform_4, window_bounds = array<i64: 2, 8>}, {transform_indices = @transform_5, window_bounds = array<i64: 2, 8>}]} {
    %c0 = arith.constant 0 : index
    %c0_0 = arith.constant 0 : index
    %0 = vector.load %arg1[%c0, %c0_0] : memref<16x16xf32, #tpu.memory_space<vmem>>, vector<16x16xf32>
    %c0_1 = arith.constant 0 : index
    %c0_2 = arith.constant 0 : index
    %1 = vector.load %arg2[%c0_1, %c0_2] : memref<16x32xf32, #tpu.memory_space<vmem>>, vector<16x32xf32>
    %cst = arith.constant dense<0.000000e+00> : vector<16x32xf32>
    %2 = tpu.matmul %0, %1, %cst {dimension_numbers = #tpu.dot_dimension_numbers<[1], [0], [0], [1], [0, 0, 1, 1], [], []>} : vector<16x16xf32>, vector<16x32xf32>, vector<16x32xf32> -> vector<16x32xf32>
    %3 = vector.shape_cast %2 : vector<16x32xf32> to vector<2x8x32xf32>
    %c0_3 = arith.constant 0 : index
    %c0_4 = arith.constant 0 : index
    %4 = vector.load %arg3[%c0_3, %c0_4] : memref<2x32xf32, #tpu.memory_space<vmem>>, vector<2x32xf32>
    %5 = vector.shape_cast %4 : vector<2x32xf32> to vector<2x1x32xf32>
    %6 = vector.broadcast %5 : vector<2x1x32xf32> to vector<2x8x32xf32>
    %7 = arith.addf %3, %6 : vector<2x8x32xf32>
    %8 = math.tanh %7 : vector<2x8x32xf32>
    %c0_5 = arith.constant 0 : index
    %c0_6 = arith.constant 0 : index
    %9 = vector.load %arg4[%c0_5, %c0_6] : memref<1x32xf32, #tpu.memory_space<vmem>>, vector<1x32xf32>
    %10 = vector.shape_cast %9 : vector<1x32xf32> to vector<1x1x32xf32>
    %11 = vector.broadcast %10 : vector<1x1x32xf32> to vector<2x8x32xf32>
    %12 = arith.mulf %8, %11 : vector<2x8x32xf32>
    %cst_7 = arith.constant dense<0.000000e+00> : vector<2x8xf32>
    %13 = vector.multi_reduction <add>, %12, %cst_7 [2] : vector<2x8x32xf32> to vector<2x8xf32>
    %c0_8 = arith.constant 0 : index
    %c0_9 = arith.constant 0 : index
    %14 = vector.load %arg5[%c0_8, %c0_9] : memref<2x8xf32, #tpu.memory_space<vmem>>, vector<2x8xf32>
    %cst_10 = arith.constant 0.000000e+00 : f32
    %15 = vector.broadcast %cst_10 : f32 to vector<2x8xf32>
    %16 = arith.cmpf ogt, %14, %15 : vector<2x8xf32>
    %cst_11 = arith.constant -9.99999995E+11 : f32
    %17 = vector.broadcast %cst_11 : f32 to vector<2x8xf32>
    %18 = arith.select %16, %13, %17 : vector<2x8xi1>, vector<2x8xf32>
    %cst_12 = arith.constant dense<0xFF800000> : vector<2xf32>
    %19 = vector.multi_reduction <maximumf>, %18, %cst_12 [1] : vector<2x8xf32> to vector<2xf32>
    %20 = vector.shape_cast %19 : vector<2xf32> to vector<2x1xf32>
    %21 = vector.broadcast %20 : vector<2x1xf32> to vector<2x8xf32>
    %22 = arith.subf %18, %21 : vector<2x8xf32>
    %23 = math.exp %22 : vector<2x8xf32>
    %cst_13 = arith.constant dense<0.000000e+00> : vector<2xf32>
    %24 = vector.multi_reduction <add>, %23, %cst_13 [1] : vector<2x8xf32> to vector<2xf32>
    %25 = vector.shape_cast %24 : vector<2xf32> to vector<2x1xf32>
    %26 = vector.broadcast %25 : vector<2x1xf32> to vector<2x8xf32>
    %27 = arith.divf %23, %26 : vector<2x8xf32>
    %c0_14 = arith.constant 0 : index
    %c0_15 = arith.constant 0 : index
    %28 = vector.load %arg6[%c0_14, %c0_15] : memref<2x8xf32, #tpu.memory_space<vmem>>, vector<2x8xf32>
    tpu.vector_store %arg6[%c0_14, %c0_15], %27 {strides = array<i32>} : memref<2x8xf32, #tpu.memory_space<vmem>>, vector<2x8xf32>,
    return
  }
  func.func @transform_0(%arg0: i32) -> (i32, i32) {
    %c0_i32 = arith.constant 0 : i32
    %c0_i32_0 = arith.constant 0 : i32
    return %arg0, %c0_i32 : i32, i32
  }
  func.func @transform_1(%arg0: i32) -> (i32, i32) {
    %c0_i32 = arith.constant 0 : i32
    %c0_i32_0 = arith.constant 0 : i32
    %c0_i32_1 = arith.constant 0 : i32
    return %c0_i32, %c0_i32_0 : i32, i32
  }
  func.func @transform_2(%arg0: i32) -> (i32, i32) {
    %c0_i32 = arith.constant 0 : i32
    %c0_i32_0 = arith.constant 0 : i32
    return %arg0, %c0_i32 : i32, i32
  }
  func.func @transform_3(%arg0: i32) -> (i32, i32) {
    %c0_i32 = arith.constant 0 : i32
    %c0_i32_0 = arith.constant 0 : i32
    %c0_i32_1 = arith.constant 0 : i32
    return %c0_i32, %c0_i32_0 : i32, i32
  }
  func.func @transform_4(%arg0: i32) -> (i32, i32) {
    %c0_i32 = arith.constant 0 : i32
    %c0_i32_0 = arith.constant 0 : i32
    return %arg0, %c0_i32 : i32, i32
  }
  func.func @transform_5(%arg0: i32) -> (i32, i32) {
    %c0_i32 = arith.constant 0 : i32
    %c0_i32_0 = arith.constant 0 : i32
    return %arg0, %c0_i32 : i32, i32
  }
}

</mosaic_0001>

<llo_original>
// kernel: tpu_custom_call.1
$region0: #{tpu_custom_call.1}
  #allocation0 [shape = 'u32[]', space=smem, size = 0x4, offset = 0x4, fixed_abs, tag = 'smem constant byte address 0x4 - core index']
  #allocation1 [shape = 'u32[72,128]{1,0:T(1,128)}', space=vmem, size = 0x9000, scoped, tag = 'internal scratch']
  %s0 = inlined_call_operand.hbm [shape: f32[16,16], index: 0, kind: input, shape index: {}]
  %s1 = inlined_call_operand.hbm [shape: f32[16,32], index: 1, kind: input, shape index: {}]
  %s2 = inlined_call_operand.hbm [shape: f32[2,32], index: 2, kind: input, shape index: {}]
  %s3 = inlined_call_operand.vmem [shape: f32[1,32], index: 3, kind: input, shape index: {}]
  %s4 = inlined_call_operand.vmem [shape: f32[2,8], index: 4, kind: input, shape index: {}]
  %s5 = inlined_call_operand.hbm [shape: f32[2,8], index: 5, kind: output, shape index: {}]
  %s6 = sld [smem:[#allocation0]]
  $region42: #{tpu_custom_call.1} parent=0
    _
  %s8 = ssub.s32 1, %s6
  %s9 = scalar_select 0, %s8, %s6
  $region1: #{tpu_custom_call.1} parent=0
    #allocation2 [shape = 'u8[8192]{0}', space=vmem, size = 0x2000, scoped, tag = 'input window, operand 0, single buffered']
    #allocation3 [shape = 's32[1]{0}', space=sflag, size = 0x4, scoped, tag = 'scoped memory for tpu_custom_call.1']
    #allocation4 [shape = 's32[1]{0}', space=sflag, size = 0x4, scoped, tag = 'scoped memory for tpu_custom_call.1']
    #allocation5 [shape = 'u8[8192]{0}', space=vmem, size = 0x2000, scoped, tag = 'input window, operand 1, single buffered']
    #allocation6 [shape = 's32[1]{0}', space=sflag, size = 0x4, scoped, tag = 'scoped memory for tpu_custom_call.1']
    #allocation7 [shape = 'u8[1024]{0}', space=vmem, size = 0x400, scoped, tag = 'input window, operand 2, single buffered']
    #allocation8 [shape = 'u8[1024]{0}', space=vmem, size = 0x400, scoped, tag = 'output window, operand 0, single buffered']
    %10 = vsyncpa [#allocation3], 0
    %11 = vsyncpa [#allocation6], 0
    %12 = vsyncpa [#allocation4], 0
    // Predicated region
    $region2: #{tpu_custom_call.1} parent=1 // pred_check
      _
    $region3: #{tpu_custom_call.1} parent=1 // pred_check_branch
      %14 = sbr.rel (0) target = $region5
    $region4: #{tpu_custom_call.1} parent=1 // pred_region
      %16 = vsyncadd [#allocation3], 0
      %s17 = sshll.u32 %s0, 4
      %s18 = int_to_ptr.hbm [resolvable:$true] %s17
      %s19 = sshll.u32 [#allocation2], 4
      %s20 = int_to_ptr.vmem [resolvable:$true] %s19
      %25 = dma.hbm_to_vmem [thread:$0]  %s18, 256, %s20, [#allocation3], 128, 128, 8
    $region5: #{tpu_custom_call.1} parent=1 // pred_fallthru
      _
    // Predicated region
    $region6: #{tpu_custom_call.1} parent=1 // pred_check
      _
    $region7: #{tpu_custom_call.1} parent=1 // pred_check_branch
      %27 = sbr.rel (0) target = $region9
    $region8: #{tpu_custom_call.1} parent=1 // pred_region
      %29 = vsyncadd [#allocation6], 0
      %s30 = sshll.u32 %s1, 4
      %s31 = int_to_ptr.hbm [resolvable:$true] %s30
      %s32 = sshll.u32 [#allocation5], 4
      %s33 = int_to_ptr.vmem [resolvable:$true] %s32
      %38 = dma.hbm_to_vmem [thread:$0]  %s31, 256, %s33, [#allocation6], 128, 128, 8
    $region9: #{tpu_custom_call.1} parent=1 // pred_fallthru
      _
    // Predicated region
    $region10: #{tpu_custom_call.1} parent=1 // pred_check
      _
    $region11: #{tpu_custom_call.1} parent=1 // pred_check_branch
      %40 = sbr.rel (0) target = $region13
    $region12: #{tpu_custom_call.1} parent=1 // pred_region
      %42 = vsyncadd [#allocation6], 0
      %s44 = sshll.u32 %s2, 4
      %s45 = int_to_ptr.hbm [resolvable:$true] %s44
      %s46 = sshll.u32 [#allocation7], 4
      %s47 = int_to_ptr.vmem [resolvable:$true] %s46
      %49 = dma.hbm_to_vmem [thread:$0]  %s45, 32, %s47, [#allocation6]
    $region13: #{tpu_custom_call.1} parent=1 // pred_fallthru
      _
    // Predicated region
    $region14: #{tpu_custom_call.1} parent=1 // pred_check
      _
    $region15: #{tpu_custom_call.1} parent=1 // pred_check_branch
      %51 = sbr.rel (0) target = $region17
    $region16: #{tpu_custom_call.1} parent=1 // pred_region
      _
    $region17: #{tpu_custom_call.1} parent=1 // pred_fallthru
      _
    // Predicated region
    $region18: #{tpu_custom_call.1} parent=1 // pred_check
      _
    $region19: #{tpu_custom_call.1} parent=1 // pred_check_branch
      %53 = sbr.rel (0) target = $region21
    $region20: #{tpu_custom_call.1} parent=1 // pred_region
      _
    $region21: #{tpu_custom_call.1} parent=1 // pred_fallthru
      _
    // Predicated region
    $region22: #{tpu_custom_call.1} parent=1 // pred_check
      _
    $region23: #{tpu_custom_call.1} parent=1 // pred_check_branch
      %55 = sbr.rel (0) target = $region25
    $region24: #{tpu_custom_call.1} parent=1 // pred_region
      %57 = dma.done [#allocation3], 256
    $region25: #{tpu_custom_call.1} parent=1 // pred_fallthru
      _
    // Predicated region
    $region26: #{tpu_custom_call.1} parent=1 // pred_check
      _
    $region27: #{tpu_custom_call.1} parent=1 // pred_check_branch
      %59 = sbr.rel (0) target = $region29
    $region28: #{tpu_custom_call.1} parent=1 // pred_region
      %61 = dma.done [#allocation6], 256
    $region29: #{tpu_custom_call.1} parent=1 // pred_fallthru
      _
    // Predicated region
    $region30: #{tpu_custom_call.1} parent=1 // pred_check
      _
    $region31: #{tpu_custom_call.1} parent=1 // pred_check_branch
      %63 = sbr.rel (0) target = $region33
    $region32: #{tpu_custom_call.1} parent=1 // pred_region
      %65 = dma.done [#allocation6], 32
    $region33: #{tpu_custom_call.1} parent=1 // pred_fallthru
      _
    %v66 = vld [vmem:[#allocation2] sm:$0xff]
    %v67 = vld [vmem:[#allocation2 + $0x8] sm:$0xff]
    %v68 = vld [vmem:[#allocation5] sm:$0xff]
    %v69 = vld [vmem:[#allocation5 + $0x8] sm:$0xff]
    %vm70 = vcmask 130048
    %v72 = vsel %vm70, %v66, 0
    %v75 = vsel %vm70, %v67, 0
    %77 = vmatpush.msra.mxu0 0.0
    %78 = vmatpush.msra.mxu0 0.0
    %79 = vmatpush.msra.mxu0 0.0
    %80 = vmatpush.msra.mxu0 0.0
    %81 = vmatpush.msra.mxu0 0.0
    %82 = vmatpush.msra.mxu0 0.0
    %83 = vmatpush.msra.mxu0 0.0
    %84 = vmatpush.msra.mxu0 0.0
    %85 = vmatpush.msra.mxu0 0.0
    %86 = vmatpush.msra.mxu0 0.0
    %87 = vmatpush.msra.mxu0 0.0
    %88 = vmatpush.msra.mxu0 0.0
    %89 = vmatpush.msra.mxu0 0.0
    %90 = vmatpush.msra.mxu0 0.0
    %91 = vmatpush.msra.mxu0 %v69
    %92 = vmatpush.msra.mxu0 %v68
    %93 = vmatmul.f32.gmra.mxu0 %v72
    %v94 = vpop.f32.mrf.mxu0
    %v95 = vadd.f32 0.0, %v94
    %96 = vmatmul.f32.gmra.mxu0 %v75
    %v97 = vpop.f32.mrf.mxu0
    %v98 = vadd.f32 0.0, %v97
    %99 = vdwg.mxu0
    %v100 = vld [vmem:[#allocation7] sm:$0x3]
    %v102 = vrot.slane %v100, 1
    %v103 = vperm.slane %v100, 0
    %v104 = vperm.slane %v102, 0
    %v107 = vadd.f32 %v95, %v103
    %v108 = vadd.f32 %v98, %v104
    %v109 = vtanh.pop %v107
    %v110 = vtanh.pop %v108
    %v111 = vld [vmem:[%s3] sm:$0x1]
    %v113 = vperm.slane %v111, 0
    %v115 = vmul.f32 %v109, %v113
    %v116 = vmul.f32 %v110, %v113
    %vm117 = vcmask 261120
    %v118 = vsel %vm117, %v115, 0.0
    %119 = vadd.xlane.f32.xlu0 %v118
    %v120 = vpop.xlane.xlu0 %119
    %v121 = vsel %vm117, %v116, 0.0
    %122 = vadd.xlane.f32.xlu0 %v121
    %v123 = vpop.xlane.xlu0 %122
    %v124 = vld [vmem:[%s4] sm:$0x3]
    %vm125 = vcmp.gt.f32.partialorder %v124, 0.0
    %v128 = vlaneseq
    %v129 = vand.u32 %v128, 127
    %v130 = vperm.slane %v120, %v129
    %v131 = vperm.slane %v123, %v129
    %vm132 = vcmask 1041409
    %v133 = vsel %vm132, %v131, %v130
    %v135 = vsel %vm125, %v133, -1e+12
    %vm136 = vcmask 58368
    %v137 = vsel %vm136, %v135, -inf
    %138 = vmax.xlane.f32.xlu0 %v137
    %v139 = vpop.xlane.xlu0 %138
    %v140 = vsub.f32 %v135, %v139
    %v141 = vmul.f32 %v140, 1.442695
    %v142 = vpow.pop %v141
    %v143 = vsel %vm136, %v142, 0.0
    %144 = vadd.xlane.f32.xlu0 %v143
    %v145 = vpop.xlane.xlu0 %144
    %v146 = vrcp.pop %v145
    %v147 = vmul.f32 %v145, %v146
    %v148 = vsub.f32 1.0, %v147
    %v149 = vmul.f32 %v146, %v148
    %v150 = vadd.f32 %v146, %v149
    %vm151 = vweird.f32 %v145
    %vm152 = vweird.f32 %v146
    %vm153 = vmor %vm151, %vm152
    %v154 = vsel %vm153, %v146, %v150
    %v155 = vand.u32 2147483647, %v145
    %vm156 = vcmp.eq.f32.partialorder %v155, 8.507059e+37
    %v157 = vand.u32 %v145, 2147483648
    %v158 = vor.u32 1.1754944e-38, %v157
    %v159 = vsel %vm156, %v158, %v154
    %v160 = vmul.f32 %v142, %v159
    %161 = vst.msk [vmem:[#allocation8] sm:$0x3] %vm136, %v160
    // Predicated region
    $region34: #{tpu_custom_call.1} parent=1 // pred_check
      _
    $region35: #{tpu_custom_call.1} parent=1 // pred_check_branch
      %163 = sbr.rel (0) target = $region37
    $region36: #{tpu_custom_call.1} parent=1 // pred_region
      %165 = vsyncadd [#allocation4], 0
      %s167 = sshll.u32 [#allocation8], 4
      %s168 = int_to_ptr.vmem [resolvable:$true] %s167
      %s169 = sshll.u32 %s5, 4
      %s170 = int_to_ptr.hbm [resolvable:$true] %s169
      %172 = dma.vmem_to_hbm [thread:$0]  %s168, 32, %s170, [#allocation4]
    $region37: #{tpu_custom_call.1} parent=1 // pred_fallthru
      _
    // Predicated region
    $region38: #{tpu_custom_call.1} parent=1 // pred_check
      _
    $region39: #{tpu_custom_call.1} parent=1 // pred_check_branch
      %174 = sbr.rel (0) target = $region41
    $region40: #{tpu_custom_call.1} parent=1 // pred_region
      %176 = dma.done [#allocation4], 32
    $region41: #{tpu_custom_call.1} parent=1 // pred_fallthru
      _
    %177 = vsyncpa [#allocation3], 1
    %178 = vsyncpa [#allocation6], 1
    %179 = vsyncpa [#allocation4], 1

</llo_original>
